<compile_context>
chip_gen: v7x
topology: tpu7x:2x2x1
jax: 0.10.0
libtpu: 0.0.40
codegen_flags: <defaults>
</compile_context>

<pallas_src>
import jax
import jax.numpy as jnp
from jax.experimental import pallas as pl
from jax.experimental.pallas import tpu as pltpu


def _bitparm_kernel(x_ref, sph_ref, b_ref, ta_ref, o_ref):
    # x_ref: (1, C, T) tile ; sph/b/ta: (C, 1) precomputed per-channel params
    t = x_ref[...] * sph_ref[...] + b_ref[...]
    o_ref[...] = (t + jnp.tanh(t) * ta_ref[...]).astype(o_ref.dtype)


def _bitparm_final_kernel(x_ref, sph_ref, b_ref, o_ref):
    t = x_ref[...] * sph_ref[...] + b_ref[...]
    o_ref[...] = jax.nn.sigmoid(t).astype(o_ref.dtype)


def _pick_hw_tile(C, HW, itemsize):
    """Largest lane tile (multiple of 128, capped) that keeps double-buffered
    input+output blocks within ~8 MiB of VMEM."""
    budget = 8 * 1024 * 1024                      # bytes for 2x(in+out) buffers
    max_lanes = budget // (4 * max(C, 1) * itemsize)
    max_lanes = max(128, (max_lanes // 128) * 128)
    tile = int(min(8192, max_lanes))
    if HW <= tile:
        return int(HW)   # full extent (always a legal block, covers HW < 128)
    return tile


def bitparm_forward(x, h, b, a=None, *, final=False):
    """x: (N, C, H, W); h, b, a: (1, C, 1, 1). Returns (N, C, H, W)."""
    N, C, H, W = x.shape
    HW = H * W

    # Free reshape: channel on sublanes, flattened spatial axis on lanes.
    x3 = x.reshape(N, C, HW)

    # Hoist loop-invariant per-channel transcendentals out of the kernel.
    # jax.nn.softplus is the numerically stable form (no overflow for large h).
    sph2 = jax.nn.softplus(h).reshape(C, 1).astype(x.dtype)
    b2 = b.reshape(C, 1).astype(x.dtype)

    hw_tile = _pick_hw_tile(C, HW, x.dtype.itemsize)
    grid = (N, pl.cdiv(HW, hw_tile))

    x_spec = pl.BlockSpec((1, C, hw_tile), lambda n, j: (n, 0, j))
    p_spec = pl.BlockSpec((C, 1), lambda n, j: (0, 0))
    out_spec = pl.BlockSpec((1, C, hw_tile), lambda n, j: (n, 0, j))
    cparams = pltpu.CompilerParams(dimension_semantics=("parallel", "parallel"))

    if final:
        out3 = pl.pallas_call(
            _bitparm_final_kernel,
            out_shape=jax.ShapeDtypeStruct((N, C, HW), x.dtype),
            grid=grid,
            in_specs=[x_spec, p_spec, p_spec],
            out_specs=out_spec,
            compiler_params=cparams,
        )(x3, sph2, b2)
    else:
        ta2 = jnp.tanh(a).reshape(C, 1).astype(x.dtype)
        out3 = pl.pallas_call(
            _bitparm_kernel,
            out_shape=jax.ShapeDtypeStruct((N, C, HW), x.dtype),
            grid=grid,
            in_specs=[x_spec, p_spec, p_spec, p_spec],
            out_specs=out_spec,
            compiler_params=cparams,
        )(x3, sph2, b2, ta2)

    # Free reshape back to NCHW.
    return out3.reshape(N, C, H, W)


def _reference(x, h, b, a=None, *, final=False):
    sp_h = jax.nn.softplus(h)
    t = x * sp_h + b
    if final:
        return jax.nn.sigmoid(t)
    return t + jnp.tanh(t) * jnp.tanh(a)


if __name__ == "__main__":
    key = jax.random.PRNGKey(0)
    kx, kh, kb, ka = jax.random.split(key, 4)

    N, C, H, W = 2, 4, 16, 16
    x = jax.random.normal(kx, (N, C, H, W), dtype=jnp.float32)
    # Deterministic parameter init matching nn.init.normal_(mean=0, std=0.01)
    h = 0.01 * jax.random.normal(kh, (1, C, 1, 1), dtype=jnp.float32)
    b = 0.01 * jax.random.normal(kb, (1, C, 1, 1), dtype=jnp.float32)
    a = 0.01 * jax.random.normal(ka, (1, C, 1, 1), dtype=jnp.float32)

    # non-final Bitparm
    out = bitparm_forward(x, h, b, a, final=False)
    out = jax.block_until_ready(out)
    ref = _reference(x, h, b, a, final=False)
    assert out.shape == (N, C, H, W)
    assert jnp.allclose(out, ref, atol=1e-5, rtol=1e-5)

    # final Bitparm (a is None, sigmoid output)
    out_f = bitparm_forward(x, h, b, final=True)
    out_f = jax.block_until_ready(out_f)
    ref_f = _reference(x, h, b, final=True)
    assert jnp.allclose(out_f, ref_f, atol=1e-5, rtol=1e-5)

    print("KERNEL_OK")
</pallas_src>

<mosaic_0001>
module attributes {stable_mosaic.version = 11 : i64} {
  func.func @_bitparm_kernel(%arg0: i32, %arg1: i32, %arg2: memref<1x4x256xf32, #tpu.memory_space<vmem>>, %arg3: memref<4x1xf32, #tpu.memory_space<vmem>>, %arg4: memref<4x1xf32, #tpu.memory_space<vmem>>, %arg5: memref<4x1xf32, #tpu.memory_space<vmem>>, %arg6: memref<1x4x256xf32, #tpu.memory_space<vmem>>) attributes {dimension_semantics = [#tpu.dimension_semantics<parallel>, #tpu.dimension_semantics<parallel>], iteration_bounds = array<i64: 2, 1>, scalar_prefetch = 0 : i64, scratch_operands = 0 : i64, tpu.core_type = #tpu.core_type<tc>, window_params = [{transform_indices = @transform_0, window_bounds = array<i64: 1, 4, 256>}, {pipeline_mode = #tpu.pipeline_mode<synchronous>, transform_indices = @transform_1, window_bounds = array<i64: 4, 1>}, {pipeline_mode = #tpu.pipeline_mode<synchronous>, transform_indices = @transform_2, window_bounds = array<i64: 4, 1>}, {pipeline_mode = #tpu.pipeline_mode<synchronous>, transform_indices = @transform_3, window_bounds = array<i64: 4, 1>}, {transform_indices = @transform_4, window_bounds = array<i64: 1, 4, 256>}]} {
    %c0 = arith.constant 0 : index
    %c0_0 = arith.constant 0 : index
    %c0_1 = arith.constant 0 : index
    %0 = vector.load %arg2[%c0, %c0_0, %c0_1] : memref<1x4x256xf32, #tpu.memory_space<vmem>>, vector<1x4x256xf32>
    %c0_2 = arith.constant 0 : index
    %c0_3 = arith.constant 0 : index
    %1 = vector.load %arg3[%c0_2, %c0_3] : memref<4x1xf32, #tpu.memory_space<vmem>>, vector<4x1xf32>
    %2 = vector.shape_cast %1 : vector<4x1xf32> to vector<1x4x1xf32>
    %3 = vector.broadcast %2 : vector<1x4x1xf32> to vector<1x4x256xf32>
    %4 = arith.mulf %0, %3 : vector<1x4x256xf32>
    %c0_4 = arith.constant 0 : index
    %c0_5 = arith.constant 0 : index
    %5 = vector.load %arg4[%c0_4, %c0_5] : memref<4x1xf32, #tpu.memory_space<vmem>>, vector<4x1xf32>
    %6 = vector.shape_cast %5 : vector<4x1xf32> to vector<1x4x1xf32>
    %7 = vector.broadcast %6 : vector<1x4x1xf32> to vector<1x4x256xf32>
    %8 = arith.addf %4, %7 : vector<1x4x256xf32>
    %9 = math.tanh %8 : vector<1x4x256xf32>
    %c0_6 = arith.constant 0 : index
    %c0_7 = arith.constant 0 : index
    %10 = vector.load %arg5[%c0_6, %c0_7] : memref<4x1xf32, #tpu.memory_space<vmem>>, vector<4x1xf32>
    %11 = vector.shape_cast %10 : vector<4x1xf32> to vector<1x4x1xf32>
    %12 = vector.broadcast %11 : vector<1x4x1xf32> to vector<1x4x256xf32>
    %13 = arith.mulf %9, %12 : vector<1x4x256xf32>
    %14 = arith.addf %8, %13 : vector<1x4x256xf32>
    %c0_8 = arith.constant 0 : index
    %c0_9 = arith.constant 0 : index
    %c0_10 = arith.constant 0 : index
    %15 = vector.load %arg6[%c0_8, %c0_9, %c0_10] : memref<1x4x256xf32, #tpu.memory_space<vmem>>, vector<1x4x256xf32>
    tpu.vector_store %arg6[%c0_8, %c0_9, %c0_10], %14 {strides = array<i32>} : memref<1x4x256xf32, #tpu.memory_space<vmem>>, vector<1x4x256xf32>,
    return
  }
  func.func @transform_0(%arg0: i32, %arg1: i32) -> (i32, i32, i32) {
    %c0_i32 = arith.constant 0 : i32
    %c0_i32_0 = arith.constant 0 : i32
    return %arg0, %c0_i32, %arg1 : i32, i32, i32
  }
  func.func @transform_1(%arg0: i32, %arg1: i32) -> (i32, i32) {
    %c0_i32 = arith.constant 0 : i32
    %c0_i32_0 = arith.constant 0 : i32
    %c0_i32_1 = arith.constant 0 : i32
    return %c0_i32, %c0_i32_0 : i32, i32
  }
  func.func @transform_2(%arg0: i32, %arg1: i32) -> (i32, i32) {
    %c0_i32 = arith.constant 0 : i32
    %c0_i32_0 = arith.constant 0 : i32
    %c0_i32_1 = arith.constant 0 : i32
    return %c0_i32, %c0_i32_0 : i32, i32
  }
  func.func @transform_3(%arg0: i32, %arg1: i32) -> (i32, i32) {
    %c0_i32 = arith.constant 0 : i32
    %c0_i32_0 = arith.constant 0 : i32
    %c0_i32_1 = arith.constant 0 : i32
    return %c0_i32, %c0_i32_0 : i32, i32
  }
  func.func @transform_4(%arg0: i32, %arg1: i32) -> (i32, i32, i32) {
    %c0_i32 = arith.constant 0 : i32
    %c0_i32_0 = arith.constant 0 : i32
    return %arg0, %c0_i32, %arg1 : i32, i32, i32
  }
}

</mosaic_0001>

<llo_original>
// kernel: tpu_custom_call.1
$region0: #{tpu_custom_call.1}
  #allocation0 [shape = 'u32[]', space=smem, size = 0x4, offset = 0x4, fixed_abs, tag = 'smem constant byte address 0x4 - core index']
  #allocation1 [shape = 'u32[144,128]{1,0:T(1,128)}', space=vmem, size = 0x12000, scoped, tag = 'internal scratch']
  %s0 = inlined_call_operand.hbm [shape: f32[2,4,256], index: 0, kind: input, shape index: {}]
  %s1 = inlined_call_operand.vmem [shape: f32[4,1], index: 1, kind: input, shape index: {}]
  %s2 = inlined_call_operand.vmem [shape: f32[4,1], index: 2, kind: input, shape index: {}]
  %s3 = inlined_call_operand.vmem [shape: f32[4,1], index: 3, kind: input, shape index: {}]
  %s4 = inlined_call_operand.hbm [shape: f32[2,4,256], index: 4, kind: output, shape index: {}]
  %s5 = sld [smem:[#allocation0]]
  $region53: #{tpu_custom_call.1} parent=0
    _
  %s7 = ssub.s32 1, %s5
  %s8 = scalar_select 0, %s7, %s5
  $region1: #{tpu_custom_call.1} parent=0
    #allocation2 [shape = 'u8[8192]{0}', space=vmem, size = 0x2000, scoped, tag = 'input window, operand 0']
    #allocation3 [shape = 's32[2]{0}', space=sflag, size = 0x8, scoped, tag = 'scoped memory for tpu_custom_call.1']
    #allocation4 [shape = 's32[2]{0}', space=sflag, size = 0x8, scoped, tag = 'scoped memory for tpu_custom_call.1']
    #allocation5 [shape = 'u8[8192]{0}', space=vmem, size = 0x2000, scoped, tag = 'output window, operand 0']
    %9 = vsyncpa [#allocation3], 0
    %s10 = scalar_lea.sflag [#allocation3], 1
    %11 = vsyncpa %s10, 0
    %12 = vsyncpa [#allocation4], 0
    %s13 = scalar_lea.sflag [#allocation4], 1
    %14 = vsyncpa %s13, 0
    loop: start=0, step=1, limit=4
    $region2: #{tpu_custom_call.1} parent=1 // loop_pre_header
      _
    $region3: #{tpu_custom_call.1} parent=1 // loop_header
      %s16 = sphi 0, %s20
      %p17 = scmp.ge.s32.totalorder %s16, 4
      %s23 = sphi 0, %s35
      %s24 = sphi 0, %s31
      %s25 = sphi 0, %s23
      %s26 = sphi 0, %s24
      %s27 = sphi 0, %s25
      %s28 = sphi 0, %s26
      %s40 = sphi 0, %s42
      %s43 = sphi 0, %s40
      %s44 = sphi 0, %s43
      %s60 = sphi 0, %s44
      %s64 = sphi 0, %s64
      %s66 = sphi 0, %s64
      %s67 = sphi 0, %s66
      %s81 = sphi 0, %s67
      %s85 = sphi 0, %s85
      %s87 = sphi 0, %s85
      %s88 = sphi 0, %s87
      %s102 = sphi 0, %s88
      %s106 = sphi 0, %s106
      %s108 = sphi 0, %s106
      %s109 = sphi 0, %s108
      %s123 = sphi 0, %s109
      %s131 = sphi 0, %s133
      %s134 = sphi 0, %s131
      %s135 = sphi 0, %s134
      %s151 = sphi 0, %s135
    $region4: #{tpu_custom_call.1} parent=1 // loop_header_branch
      %19 = sbr.rel (%p17) target = $region8
    $region5: #{tpu_custom_call.1} parent=1 // loop_body
      %s21 = ssub.s32 %s16, 1
      %s22 = ssub.s32 %s16, 2
      %s29 = sadd.s32 1, %s24
      %p30 = scmp.ge.s32.totalorder %s29, 1
      %s31 = scalar_select %p30, 0, %s29
      %s32 = sadd.s32 1, %s23
      %s33 = scalar_select %p30, %s32, %s23
      %p34 = scmp.ge.s32.totalorder %s33, 2
      %s35 = scalar_select %p34, 0, %s33
      %s36 = ssub.s32 %s23, %s35
      %s37 = ssub.s32 %s24, %s31
      %s38 = sor.u32 %s36, %s37
      %p39 = scmp.eq.s32.totalorder %s38, 0
      %s41 = sadd.s32 %s40, 1
      %s42 = scalar_select %p39, %s40, %s41
      %p45 = pneg %p39
      %p46 = scmp.eq.s32.totalorder %s16, 1
      %p47 = por %p45, %p46
      %p48 = scmp.ne.s32.totalorder %s40, %s43
      %p49 = scmp.eq.s32.totalorder %s16, 0
      %p50 = por %p48, %p49
      %p51 = scmp.ne.s32.totalorder %s40, %s43
      %p52 = scmp.eq.s32.totalorder %s21, 1
      %p53 = por %p51, %p52
      %p54 = scmp.ne.s32.totalorder %s43, %s44
      %p55 = scmp.eq.s32.totalorder %s21, 0
      %p56 = por %p54, %p55
      %p57 = scmp.ne.s32.totalorder %s43, %s44
      %p58 = scmp.eq.s32.totalorder %s22, 1
      %p59 = por %p57, %p58
      %p61 = scmp.ne.s32.totalorder %s44, %s60
      %p62 = scmp.eq.s32.totalorder %s22, 0
      %p63 = por %p61, %p62
      %s65 = sadd.s32 %s64, 1
      %p68 = scmp.eq.s32.totalorder %s16, 1
      %p69 = scmp.ne.s32.totalorder %s64, %s66
      %p70 = scmp.eq.s32.totalorder %s16, 0
      %p71 = por %p69, %p70
      %p72 = scmp.ne.s32.totalorder %s64, %s66
      %p73 = scmp.eq.s32.totalorder %s21, 1
      %p74 = por %p72, %p73
      %p75 = scmp.ne.s32.totalorder %s66, %s67
      %p76 = scmp.eq.s32.totalorder %s21, 0
      %p77 = por %p75, %p76
      %p78 = scmp.ne.s32.totalorder %s66, %s67
      %p79 = scmp.eq.s32.totalorder %s22, 1
      %p80 = por %p78, %p79
      %p82 = scmp.ne.s32.totalorder %s67, %s81
      %p83 = scmp.eq.s32.totalorder %s22, 0
      %p84 = por %p82, %p83
      %s86 = sadd.s32 %s85, 1
      %p89 = scmp.eq.s32.totalorder %s16, 1
      %p90 = scmp.ne.s32.totalorder %s85, %s87
      %p91 = scmp.eq.s32.totalorder %s16, 0
      %p92 = por %p90, %p91
      %p93 = scmp.ne.s32.totalorder %s85, %s87
      %p94 = scmp.eq.s32.totalorder %s21, 1
      %p95 = por %p93, %p94
      %p96 = scmp.ne.s32.totalorder %s87, %s88
      %p97 = scmp.eq.s32.totalorder %s21, 0
      %p98 = por %p96, %p97
      %p99 = scmp.ne.s32.totalorder %s87, %s88
      %p100 = scmp.eq.s32.totalorder %s22, 1
      %p101 = por %p99, %p100
      %p103 = scmp.ne.s32.totalorder %s88, %s102
      %p104 = scmp.eq.s32.totalorder %s22, 0
      %p105 = por %p103, %p104
      %s107 = sadd.s32 %s106, 1
      %p110 = scmp.eq.s32.totalorder %s16, 1
      %p111 = scmp.ne.s32.totalorder %s106, %s108
      %p112 = scmp.eq.s32.totalorder %s16, 0
      %p113 = por %p111, %p112
      %p114 = scmp.ne.s32.totalorder %s106, %s108
      %p115 = scmp.eq.s32.totalorder %s21, 1
      %p116 = por %p114, %p115
      %p117 = scmp.ne.s32.totalorder %s108, %s109
      %p118 = scmp.eq.s32.totalorder %s21, 0
      %p119 = por %p117, %p118
      %p120 = scmp.ne.s32.totalorder %s108, %s109
      %p121 = scmp.eq.s32.totalorder %s22, 1
      %p122 = por %p120, %p121
      %p124 = scmp.ne.s32.totalorder %s109, %s123
      %p125 = scmp.eq.s32.totalorder %s22, 0
      %p126 = por %p124, %p125
      %s127 = ssub.s32 %s23, %s35
      %s128 = ssub.s32 %s24, %s31
      %s129 = sor.u32 %s127, %s128
      %p130 = scmp.eq.s32.totalorder %s129, 0
      %s132 = sadd.s32 %s131, 1
      %s133 = scalar_select %p130, %s131, %s132
      %p136 = pneg %p130
      %p137 = scmp.eq.s32.totalorder %s16, 1
      %p138 = por %p136, %p137
      %p139 = scmp.ne.s32.totalorder %s131, %s134
      %p140 = scmp.eq.s32.totalorder %s16, 0
      %p141 = por %p139, %p140
      %p142 = scmp.ne.s32.totalorder %s131, %s134
      %p143 = scmp.eq.s32.totalorder %s21, 1
      %p144 = por %p142, %p143
      %p145 = scmp.ne.s32.totalorder %s134, %s135
      %p146 = scmp.eq.s32.totalorder %s21, 0
      %p147 = por %p145, %p146
      %p148 = scmp.ne.s32.totalorder %s134, %s135
      %p149 = scmp.eq.s32.totalorder %s22, 1
      %p150 = por %p148, %p149
      %p152 = scmp.ne.s32.totalorder %s135, %s151
      %p153 = scmp.eq.s32.totalorder %s22, 0
      %p154 = por %p152, %p153
      %p155 = scmp.le.s32.totalorder 1, %s16
      %p156 = scmp.lt.s32.totalorder %s16, 3
      %p157 = pnand %p155, %p156
      %p158 = pneg %p157
      // Predicated region
      $region9: #{tpu_custom_call.1} parent=5 // pred_check
        _
      $region10: #{tpu_custom_call.1} parent=5 // pred_check_branch
        %160 = sbr.rel (%p157) target = $region12
      $region11: #{tpu_custom_call.1} parent=5 // pred_region
        %s161 = ssub.s32 %s16, 1
        // Predicated region
        $region13: #{tpu_custom_call.1} parent=11 // pred_check
          %p162 = pneg %p77
        $region14: #{tpu_custom_call.1} parent=11 // pred_check_branch
          %164 = sbr.rel (%p162) target = $region16
        $region15: #{tpu_custom_call.1} parent=11 // pred_region
          _
        $region16: #{tpu_custom_call.1} parent=11 // pred_fallthru
          _
        // Predicated region
        $region17: #{tpu_custom_call.1} parent=11 // pred_check
          %p165 = pneg %p98
        $region18: #{tpu_custom_call.1} parent=11 // pred_check_branch
          %167 = sbr.rel (%p165) target = $region20
        $region19: #{tpu_custom_call.1} parent=11 // pred_region
          _
        $region20: #{tpu_custom_call.1} parent=11 // pred_fallthru
          _
        // Predicated region
        $region21: #{tpu_custom_call.1} parent=11 // pred_check
          %p168 = pneg %p119
        $region22: #{tpu_custom_call.1} parent=11 // pred_check_branch
          %170 = sbr.rel (%p168) target = $region24
        $region23: #{tpu_custom_call.1} parent=11 // pred_region
          _
        $region24: #{tpu_custom_call.1} parent=11 // pred_fallthru
          _
      $region12: #{tpu_custom_call.1} parent=5 // pred_fallthru
        _
      %p171 = scmp.lt.s32.totalorder %s16, 2
      // Predicated region
      $region25: #{tpu_custom_call.1} parent=5 // pred_check
        %p172 = pneg %p171
      $region26: #{tpu_custom_call.1} parent=5 // pred_check_branch
        %174 = sbr.rel (%p172) target = $region28
      $region27: #{tpu_custom_call.1} parent=5 // pred_region
        // Predicated region
        $region29: #{tpu_custom_call.1} parent=27 // pred_check
          %p175 = pneg %p50
        $region30: #{tpu_custom_call.1} parent=27 // pred_check_branch
          %177 = sbr.rel (%p175) target = $region32
        $region31: #{tpu_custom_call.1} parent=27 // pred_region
          %s178 = sand.u32 %s40, 1
          %s179 = scalar_lea.sflag [#allocation3], %s178
          %s180 = sand.u32 %s40, 1
          %s181 = smul.addr %s180, 8
          %s182 = scalar_lea.vmem [#allocation2], %s181
          %s183 = smul.u32 2, %s24
          %s185 = ssub.s32 128, 128
          %186 = vsyncadd %s179, %s185
          %s187 = smul.addr %s23, 2
          %s188 = sadd.s32 %s183, %s187
          %s189 = smul.addr %s188, 64
          %s190 = scalar_lea.hbm %s0, %s189
          %s192 = sshll.u32 %s182, 4
          %s193 = int_to_ptr.vmem [resolvable:$true] %s192
          %195 = dma.hbm_to_vmem [thread:$0]  %s190, 128, %s193, %s179
        $region32: #{tpu_custom_call.1} parent=27 // pred_fallthru
          _
      $region28: #{tpu_custom_call.1} parent=5 // pred_fallthru
        _
      %p196 = scmp.le.s32.totalorder 1, %s16
      %p197 = scmp.lt.s32.totalorder %s16, 3
      %p198 = pnand %p196, %p197
      %p199 = pneg %p198
      // Predicated region
      $region33: #{tpu_custom_call.1} parent=5 // pred_check
        _
      $region34: #{tpu_custom_call.1} parent=5 // pred_check_branch
        %201 = sbr.rel (%p198) target = $region36
      $region35: #{tpu_custom_call.1} parent=5 // pred_region
        %s202 = ssub.s32 %s16, 1
        %s203 = sand.u32 %s43, 1
        %s204 = scalar_lea.sflag [#allocation3], %s203
        %s205 = sand.u32 %s43, 1
        %s206 = smul.addr %s205, 8
        %s207 = scalar_lea.vmem [#allocation2], %s206
        // Predicated region
        $region37: #{tpu_custom_call.1} parent=35 // pred_check
          %p208 = pneg %p56
        $region38: #{tpu_custom_call.1} parent=35 // pred_check_branch
          %210 = sbr.rel (%p208) target = $region40
        $region39: #{tpu_custom_call.1} parent=35 // pred_region
          %211 = dma.done %s204, 128
        $region40: #{tpu_custom_call.1} parent=35 // pred_fallthru
          _
        %s212 = sand.u32 %s43, 1
        %s213 = scalar_lea.sflag [#allocation3], %s212
        %s214 = sand.u32 %s43, 1
        %s215 = smul.addr %s214, 8
        %s216 = scalar_lea.vmem [#allocation2], %s215
        %p217 = pneg %p56
        %p218 = pneg %p53
        %p219 = pneg %p77
        %p220 = pneg %p74
        %p221 = pneg %p98
        %p222 = pneg %p95
        %p223 = pneg %p119
        %p224 = pneg %p116
        %p225 = pneg %p147
        %p226 = pneg %p144
        %s227 = sand.u32 %s134, 1
        %s228 = scalar_lea.sflag [#allocation4], %s227
        %s229 = sand.u32 %s134, 1
        %s230 = smul.addr %s229, 8
        %s231 = scalar_lea.vmem [#allocation5], %s230
        %s232 = smul.u32 2, %s26
        %s233 = smul.u32 2, %s26
        %v234 = vld [vmem:[%s207] sm:$0xff]
        %v235 = vld [vmem:[%s1] sm:$0xf]
        %237 = vset.pattern.permute.xlu0 0
        %238 = vperm.xlu0 %237, %v235
        %v239 = vpop.permute.xlu0 %238
        %v241 = vunpack.c.l.s4 839922192
        %v242 = vunpack.c.0.s8 %v241
        %v243 = vlaneseq
        %v244 = vshrl.u32 %v243, 7
        %v245 = vsub.s32 %v242, %v244
        %v246 = vrot.slane %v239, %v245
        %v248 = vmul.f32 %v234, %v246
        %v249 = vld [vmem:[%s2] sm:$0xf]
        %251 = vset.pattern.permute.xlu0 0
        %252 = vperm.xlu0 %251, %v249
        %v253 = vpop.permute.xlu0 %252
        %v255 = vunpack.c.l.s4 839922192
        %v256 = vunpack.c.0.s8 %v255
        %v257 = vlaneseq
        %v258 = vshrl.u32 %v257, 7
        %v259 = vsub.s32 %v256, %v258
        %v260 = vrot.slane %v253, %v259
        %v262 = vadd.f32 %v248, %v260
        %v263 = vtanh.pop %v262
        %v264 = vld [vmem:[%s3] sm:$0xf]
        %266 = vset.pattern.permute.xlu0 0
        %267 = vperm.xlu0 %266, %v264
        %v268 = vpop.permute.xlu0 %267
        %v270 = vunpack.c.l.s4 839922192
        %v271 = vunpack.c.0.s8 %v270
        %v272 = vlaneseq
        %v273 = vshrl.u32 %v272, 7
        %v274 = vsub.s32 %v271, %v273
        %v275 = vrot.slane %v268, %v274
        %v277 = vmul.f32 %v263, %v275
        %v278 = vadd.f32 %v262, %v277
        %279 = vst [vmem:[%s231] sm:$0xff] %v278
        %s280 = sand.u32 %s134, 1
        %s281 = scalar_lea.sflag [#allocation4], %s280
        %s282 = sand.u32 %s134, 1
        %s283 = smul.addr %s282, 8
        %s284 = scalar_lea.vmem [#allocation5], %s283
        // Predicated region
        $region41: #{tpu_custom_call.1} parent=35 // pred_check
          %p285 = pneg %p144
        $region42: #{tpu_custom_call.1} parent=35 // pred_check_branch
          %287 = sbr.rel (%p285) target = $region44
        $region43: #{tpu_custom_call.1} parent=35 // pred_region
          %s288 = smul.u32 2, %s26
          %s290 = ssub.s32 128, 128
          %291 = vsyncadd %s281, %s290
          %s292 = smul.addr %s25, 2
          %s293 = sadd.s32 %s288, %s292
          %s294 = smul.addr %s293, 64
          %s295 = scalar_lea.hbm %s4, %s294
          %s297 = sshll.u32 %s284, 4
          %s298 = int_to_ptr.vmem [resolvable:$true] %s297
          %300 = dma.vmem_to_hbm [thread:$0]  %s298, 128, %s295, %s281
        $region44: #{tpu_custom_call.1} parent=35 // pred_fallthru
          _
      $region36: #{tpu_custom_call.1} parent=5 // pred_fallthru
        _
      %p301 = scmp.le.s32.totalorder 2, %s16
      // Predicated region
      $region45: #{tpu_custom_call.1} parent=5 // pred_check
        %p302 = pneg %p301
      $region46: #{tpu_custom_call.1} parent=5 // pred_check_branch
        %304 = sbr.rel (%p302) target = $region48
      $region47: #{tpu_custom_call.1} parent=5 // pred_region
        %s305 = ssub.s32 %s16, 2
        // Predicated region
        $region49: #{tpu_custom_call.1} parent=47 // pred_check
          %p306 = pneg %p150
        $region50: #{tpu_custom_call.1} parent=47 // pred_check_branch
          %308 = sbr.rel (%p306) target = $region52
        $region51: #{tpu_custom_call.1} parent=47 // pred_region
          %s309 = sand.u32 %s135, 1
          %s310 = scalar_lea.sflag [#allocation4], %s309
          %s311 = sand.u32 %s135, 1
          %s312 = smul.addr %s311, 8
          %s313 = scalar_lea.vmem [#allocation5], %s312
          %314 = dma.done %s310, 128
        $region52: #{tpu_custom_call.1} parent=47 // pred_fallthru
          _
      $region48: #{tpu_custom_call.1} parent=5 // pred_fallthru
        _
    $region6: #{tpu_custom_call.1} parent=1 // loop_footer
      %s20 = sadd.s32 1, %s16
    $region7: #{tpu_custom_call.1} parent=1 // loop_footer_branch
      %15 = sbr.rel target = $region3
    $region8: #{tpu_custom_call.1} parent=1 // loop_exit
      _
    %315 = vsyncpa [#allocation3], 1
    %s316 = scalar_lea.sflag [#allocation3], 1
    %317 = vsyncpa %s316, 1
    %318 = vsyncpa [#allocation4], 1
    %s319 = scalar_lea.sflag [#allocation4], 1
    %320 = vsyncpa %s319, 1

</llo_original>
